<compile_context>
chip_gen: v7x
topology: tpu7x:2x2x1
jax: 0.10.0
libtpu: 0.0.40
codegen_flags: <defaults>
</compile_context>

<pallas_src>
import functools

import jax
import jax.numpy as jnp
from jax.experimental import pallas as pl
from jax.experimental.pallas import tpu as pltpu


def _round_up(x: int, m: int) -> int:
    return ((x + m - 1) // m) * m


def _fused_mlp_kernel(x_ref, *refs, n_layers: int):
    """Fused MLP on one batch tile.

    refs layout: (w0, b0, w1, b1, ..., w_{L-1}, b_{L-1}, o_ref)
      x_ref : (tm, K0)    bf16
      w_i   : (K_i, N_i)  bf16 (VMEM-resident across the whole grid)
      b_i   : (1, N_i)    f32
      o_ref : (tm, N_L)   f32
    """
    o_ref = refs[2 * n_layers]
    h = x_ref[...]
    for li in range(n_layers):
        w = refs[2 * li][...]
        b = refs[2 * li + 1][...]
        acc = jnp.dot(h, w, preferred_element_type=jnp.float32) + b
        if li < n_layers - 1:
            # LeakyReLU(negative_slope=0.01): slope < 1 so max(x, 0.01x) is exact.
            acc = jnp.maximum(acc, 0.01 * acc)
            h = acc.astype(jnp.bfloat16)   # bf16 MXU operand for the next layer
        else:
            h = acc
    o_ref[...] = h.astype(o_ref.dtype)


def init_fnn_params(key, layers_size):
    """PyTorch-style init: U(-1/sqrt(fan_in), 1/sqrt(fan_in)).

    Returns a list of (W, b) with W of shape (in_f, out_f) and b of shape
    (1, out_f) (i.e. the transpose of PyTorch's (out_f, in_f) weight).
    """
    if len(layers_size) < 4:
        raise ValueError("network too shallow (len(layers_size) < 4)")
    params = []
    for in_f, out_f in zip(layers_size[:-1], layers_size[1:]):
        key, kw, kb = jax.random.split(key, 3)
        bound = 1.0 / jnp.sqrt(jnp.float32(in_f))
        w = jax.random.uniform(kw, (in_f, out_f), jnp.float32, -bound, bound)
        b = jax.random.uniform(kb, (1, out_f), jnp.float32, -bound, bound)
        params.append((w, b))
    return params


def fnn_forward(x, params, *, max_tm: int = 1024):
    """Forward pass of Fnn as a single fused Pallas TPU kernel.

    TODO(synk): dropout (p=0.1, train mode) and spectral_norm options are not
    implemented; the defaults (dropout=False, sn=False) are reproduced exactly.
    """
    M, K = x.shape
    n_layers = len(params)
    n_out = int(params[-1][0].shape[1])

    # Batch tile: large (mem-bound roofline), 16-sublane aligned (bf16 safe).
    # Aim for >= 2 grid steps when the batch allows it so the "parallel" axis
    # shards across v7x's two TensorCores.
    half = _round_up((_round_up(max(M, 1), 16) + 1) // 2, 16)
    tm = max(16, min(max_tm, half))
    m_pad = _round_up(max(M, 1), tm)
    grid_m = m_pad // tm

    # bf16 matmul operands; no feature-dim padding (Mosaic pads the
    # contraction inside vregs at zero HBM cost).
    x_c = x.astype(jnp.bfloat16)
    if m_pad != M:
        x_c = jnp.pad(x_c, ((0, m_pad - M), (0, 0)))

    operands = [x_c]
    in_specs = [pl.BlockSpec((tm, K), lambda i: (i, 0))]
    for (w, b) in params:
        in_f, out_f = int(w.shape[0]), int(w.shape[1])
        operands.append(w.astype(jnp.bfloat16))
        operands.append(b.astype(jnp.float32).reshape(1, out_f))
        # Whole-array blocks with a constant index_map -> resident in VMEM
        # across all batch-tile grid steps (loaded once, never re-fetched).
        in_specs.append(pl.BlockSpec((in_f, out_f), lambda i: (0, 0)))
        in_specs.append(pl.BlockSpec((1, out_f), lambda i: (0, 0)))

    kernel = functools.partial(_fused_mlp_kernel, n_layers=n_layers)

    flops = 2 * m_pad * sum(int(w.shape[0]) * int(w.shape[1]) for w, _ in params)
    bytes_accessed = (
        m_pad * K * 2                                             # x (bf16)
        + sum(int(w.size) * 2 + int(b.size) * 4 for w, b in params)
        + m_pad * n_out * 4                                       # output (f32)
    )

    out = pl.pallas_call(
        kernel,
        out_shape=jax.ShapeDtypeStruct((m_pad, n_out), jnp.float32),
        grid_spec=pltpu.PrefetchScalarGridSpec(
            num_scalar_prefetch=0,
            grid=(grid_m,),
            in_specs=in_specs,
            out_specs=pl.BlockSpec((tm, n_out), lambda i: (i, 0)),
        ),
        compiler_params=pltpu.CompilerParams(
            dimension_semantics=("parallel",),
            vmem_limit_bytes=32 * 1024 * 1024,
        ),
        cost_estimate=pl.CostEstimate(
            flops=flops, transcendentals=0, bytes_accessed=bytes_accessed),
    )(*operands)

    if m_pad != M:
        out = out[:M]
    return out


def fnn_forward_reference(x, params):
    """Pure-JAX f32 reference (matches the PyTorch module's forward)."""
    out = x.astype(jnp.float32)
    n_layers = len(params)
    for li, (w, b) in enumerate(params):
        out = out @ w.astype(jnp.float32) + b.reshape(1, -1).astype(jnp.float32)
        if li < n_layers - 1:
            out = jnp.where(out > 0, out, 0.01 * out)
    return out


if __name__ == "__main__":
    # layers_size = [in, hidden..., out] (len >= 4 as required by the module)
    layers_size = [16, 64, 64, 32, 8]

    key = jax.random.PRNGKey(0)
    key, kx1, kx2 = jax.random.split(key, 3)
    params = init_fnn_params(key, layers_size)

    # Main test: batch of 32 -> two batch tiles (exercises the grid).
    x = jax.random.normal(kx1, (32, layers_size[0]), jnp.float32)
    out = jax.block_until_ready(fnn_forward(x, params))
    ref = fnn_forward_reference(x, params)
    assert out.shape == (32, layers_size[-1])
    assert jnp.allclose(out, ref, atol=5e-2, rtol=5e-2), \
        float(jnp.max(jnp.abs(out - ref)))

    # Ragged batch (not a multiple of the tile) — handled by padding + slice.
    x2 = jax.random.normal(kx2, (13, layers_size[0]), jnp.float32)
    out2 = jax.block_until_ready(fnn_forward(x2, params))
    ref2 = fnn_forward_reference(x2, params)
    assert out2.shape == (13, layers_size[-1])
    assert jnp.allclose(out2, ref2, atol=5e-2, rtol=5e-2), \
        float(jnp.max(jnp.abs(out2 - ref2)))

    print("KERNEL_OK")
</pallas_src>

<mosaic_0001>
module attributes {stable_mosaic.version = 11 : i64} {
  func.func @_fused_mlp_kernel(%arg0: i32, %arg1: memref<16x16xbf16, #tpu.memory_space<vmem>>, %arg2: memref<16x64xbf16, #tpu.memory_space<vmem>>, %arg3: memref<1x64xf32, #tpu.memory_space<vmem>>, %arg4: memref<64x64xbf16, #tpu.memory_space<vmem>>, %arg5: memref<1x64xf32, #tpu.memory_space<vmem>>, %arg6: memref<64x32xbf16, #tpu.memory_space<vmem>>, %arg7: memref<1x32xf32, #tpu.memory_space<vmem>>, %arg8: memref<32x8xbf16, #tpu.memory_space<vmem>>, %arg9: memref<1x8xf32, #tpu.memory_space<vmem>>, %arg10: memref<16x8xf32, #tpu.memory_space<vmem>>) attributes {dimension_semantics = [#tpu.dimension_semantics<parallel>], iteration_bounds = array<i64: 2>, scalar_prefetch = 0 : i64, scratch_operands = 0 : i64, tpu.core_type = #tpu.core_type<tc>, window_params = [{transform_indices = @transform_0, window_bounds = array<i64: 16, 16>}, {pipeline_mode = #tpu.pipeline_mode<synchronous>, transform_indices = @transform_1, window_bounds = array<i64: 16, 64>}, {pipeline_mode = #tpu.pipeline_mode<synchronous>, transform_indices = @transform_2, window_bounds = array<i64: 1, 64>}, {pipeline_mode = #tpu.pipeline_mode<synchronous>, transform_indices = @transform_3, window_bounds = array<i64: 64, 64>}, {pipeline_mode = #tpu.pipeline_mode<synchronous>, transform_indices = @transform_4, window_bounds = array<i64: 1, 64>}, {pipeline_mode = #tpu.pipeline_mode<synchronous>, transform_indices = @transform_5, window_bounds = array<i64: 64, 32>}, {pipeline_mode = #tpu.pipeline_mode<synchronous>, transform_indices = @transform_6, window_bounds = array<i64: 1, 32>}, {pipeline_mode = #tpu.pipeline_mode<synchronous>, transform_indices = @transform_7, window_bounds = array<i64: 32, 8>}, {pipeline_mode = #tpu.pipeline_mode<synchronous>, transform_indices = @transform_8, window_bounds = array<i64: 1, 8>}, {transform_indices = @transform_9, window_bounds = array<i64: 16, 8>}]} {
    %c0 = arith.constant 0 : index
    %c0_0 = arith.constant 0 : index
    %0 = vector.load %arg1[%c0, %c0_0] : memref<16x16xbf16, #tpu.memory_space<vmem>>, vector<16x16xbf16>
    %c0_1 = arith.constant 0 : index
    %c0_2 = arith.constant 0 : index
    %1 = vector.load %arg2[%c0_1, %c0_2] : memref<16x64xbf16, #tpu.memory_space<vmem>>, vector<16x64xbf16>
    %c0_3 = arith.constant 0 : index
    %c0_4 = arith.constant 0 : index
    %2 = vector.load %arg3[%c0_3, %c0_4] : memref<1x64xf32, #tpu.memory_space<vmem>>, vector<1x64xf32>
    %cst = arith.constant dense<0.000000e+00> : vector<16x64xf32>
    %3 = tpu.matmul %0, %1, %cst {dimension_numbers = #tpu.dot_dimension_numbers<[1], [0], [0], [1], [0, 0, 1, 1], [], []>} : vector<16x16xbf16>, vector<16x64xbf16>, vector<16x64xf32> -> vector<16x64xf32>
    %4 = vector.broadcast %2 : vector<1x64xf32> to vector<16x64xf32>
    %5 = arith.addf %3, %4 : vector<16x64xf32>
    %cst_5 = arith.constant 0.00999999977 : f32
    %6 = vector.broadcast %cst_5 : f32 to vector<16x64xf32>
    %7 = arith.mulf %6, %5 : vector<16x64xf32>
    %8 = arith.maximumf %5, %7 : vector<16x64xf32>
    %9 = arith.truncf %8 : vector<16x64xf32> to vector<16x64xbf16>
    %c0_6 = arith.constant 0 : index
    %c0_7 = arith.constant 0 : index
    %10 = vector.load %arg4[%c0_6, %c0_7] : memref<64x64xbf16, #tpu.memory_space<vmem>>, vector<64x64xbf16>
    %c0_8 = arith.constant 0 : index
    %c0_9 = arith.constant 0 : index
    %11 = vector.load %arg5[%c0_8, %c0_9] : memref<1x64xf32, #tpu.memory_space<vmem>>, vector<1x64xf32>
    %cst_10 = arith.constant dense<0.000000e+00> : vector<16x64xf32>
    %12 = tpu.matmul %9, %10, %cst_10 {dimension_numbers = #tpu.dot_dimension_numbers<[1], [0], [0], [1], [0, 0, 1, 1], [], []>} : vector<16x64xbf16>, vector<64x64xbf16>, vector<16x64xf32> -> vector<16x64xf32>
    %13 = vector.broadcast %11 : vector<1x64xf32> to vector<16x64xf32>
    %14 = arith.addf %12, %13 : vector<16x64xf32>
    %cst_11 = arith.constant 0.00999999977 : f32
    %15 = vector.broadcast %cst_11 : f32 to vector<16x64xf32>
    %16 = arith.mulf %15, %14 : vector<16x64xf32>
    %17 = arith.maximumf %14, %16 : vector<16x64xf32>
    %18 = arith.truncf %17 : vector<16x64xf32> to vector<16x64xbf16>
    %c0_12 = arith.constant 0 : index
    %c0_13 = arith.constant 0 : index
    %19 = vector.load %arg6[%c0_12, %c0_13] : memref<64x32xbf16, #tpu.memory_space<vmem>>, vector<64x32xbf16>
    %c0_14 = arith.constant 0 : index
    %c0_15 = arith.constant 0 : index
    %20 = vector.load %arg7[%c0_14, %c0_15] : memref<1x32xf32, #tpu.memory_space<vmem>>, vector<1x32xf32>
    %cst_16 = arith.constant dense<0.000000e+00> : vector<16x32xf32>
    %21 = tpu.matmul %18, %19, %cst_16 {dimension_numbers = #tpu.dot_dimension_numbers<[1], [0], [0], [1], [0, 0, 1, 1], [], []>} : vector<16x64xbf16>, vector<64x32xbf16>, vector<16x32xf32> -> vector<16x32xf32>
    %22 = vector.broadcast %20 : vector<1x32xf32> to vector<16x32xf32>
    %23 = arith.addf %21, %22 : vector<16x32xf32>
    %cst_17 = arith.constant 0.00999999977 : f32
    %24 = vector.broadcast %cst_17 : f32 to vector<16x32xf32>
    %25 = arith.mulf %24, %23 : vector<16x32xf32>
    %26 = arith.maximumf %23, %25 : vector<16x32xf32>
    %27 = arith.truncf %26 : vector<16x32xf32> to vector<16x32xbf16>
    %c0_18 = arith.constant 0 : index
    %c0_19 = arith.constant 0 : index
    %28 = vector.load %arg8[%c0_18, %c0_19] : memref<32x8xbf16, #tpu.memory_space<vmem>>, vector<32x8xbf16>
    %c0_20 = arith.constant 0 : index
    %c0_21 = arith.constant 0 : index
    %29 = vector.load %arg9[%c0_20, %c0_21] : memref<1x8xf32, #tpu.memory_space<vmem>>, vector<1x8xf32>
    %cst_22 = arith.constant dense<0.000000e+00> : vector<16x8xf32>
    %30 = tpu.matmul %27, %28, %cst_22 {dimension_numbers = #tpu.dot_dimension_numbers<[1], [0], [0], [1], [0, 0, 1, 1], [], []>} : vector<16x32xbf16>, vector<32x8xbf16>, vector<16x8xf32> -> vector<16x8xf32>
    %31 = vector.broadcast %29 : vector<1x8xf32> to vector<16x8xf32>
    %32 = arith.addf %30, %31 : vector<16x8xf32>
    %c0_23 = arith.constant 0 : index
    %c0_24 = arith.constant 0 : index
    %33 = vector.load %arg10[%c0_23, %c0_24] : memref<16x8xf32, #tpu.memory_space<vmem>>, vector<16x8xf32>
    tpu.vector_store %arg10[%c0_23, %c0_24], %32 {strides = array<i32>} : memref<16x8xf32, #tpu.memory_space<vmem>>, vector<16x8xf32>,
    return
  }
  func.func @transform_0(%arg0: i32) -> (i32, i32) {
    %c0_i32 = arith.constant 0 : i32
    %c0_i32_0 = arith.constant 0 : i32
    return %arg0, %c0_i32 : i32, i32
  }
  func.func @transform_1(%arg0: i32) -> (i32, i32) {
    %c0_i32 = arith.constant 0 : i32
    %c0_i32_0 = arith.constant 0 : i32
    %c0_i32_1 = arith.constant 0 : i32
    return %c0_i32, %c0_i32_0 : i32, i32
  }
  func.func @transform_2(%arg0: i32) -> (i32, i32) {
    %c0_i32 = arith.constant 0 : i32
    %c0_i32_0 = arith.constant 0 : i32
    %c0_i32_1 = arith.constant 0 : i32
    return %c0_i32, %c0_i32_0 : i32, i32
  }
  func.func @transform_3(%arg0: i32) -> (i32, i32) {
    %c0_i32 = arith.constant 0 : i32
    %c0_i32_0 = arith.constant 0 : i32
    %c0_i32_1 = arith.constant 0 : i32
    return %c0_i32, %c0_i32_0 : i32, i32
  }
  func.func @transform_4(%arg0: i32) -> (i32, i32) {
    %c0_i32 = arith.constant 0 : i32
    %c0_i32_0 = arith.constant 0 : i32
    %c0_i32_1 = arith.constant 0 : i32
    return %c0_i32, %c0_i32_0 : i32, i32
  }
  func.func @transform_5(%arg0: i32) -> (i32, i32) {
    %c0_i32 = arith.constant 0 : i32
    %c0_i32_0 = arith.constant 0 : i32
    %c0_i32_1 = arith.constant 0 : i32
    return %c0_i32, %c0_i32_0 : i32, i32
  }
  func.func @transform_6(%arg0: i32) -> (i32, i32) {
    %c0_i32 = arith.constant 0 : i32
    %c0_i32_0 = arith.constant 0 : i32
    %c0_i32_1 = arith.constant 0 : i32
    return %c0_i32, %c0_i32_0 : i32, i32
  }
  func.func @transform_7(%arg0: i32) -> (i32, i32) {
    %c0_i32 = arith.constant 0 : i32
    %c0_i32_0 = arith.constant 0 : i32
    %c0_i32_1 = arith.constant 0 : i32
    return %c0_i32, %c0_i32_0 : i32, i32
  }
  func.func @transform_8(%arg0: i32) -> (i32, i32) {
    %c0_i32 = arith.constant 0 : i32
    %c0_i32_0 = arith.constant 0 : i32
    %c0_i32_1 = arith.constant 0 : i32
    return %c0_i32, %c0_i32_0 : i32, i32
  }
  func.func @transform_9(%arg0: i32) -> (i32, i32) {
    %c0_i32 = arith.constant 0 : i32
    %c0_i32_0 = arith.constant 0 : i32
    return %arg0, %c0_i32 : i32, i32
  }
}

</mosaic_0001>

<llo_original>
// kernel: tpu_custom_call.1
$region0: #{tpu_custom_call.1}
  #allocation0 [shape = 'u32[]', space=smem, size = 0x4, offset = 0x4, fixed_abs, tag = 'smem constant byte address 0x4 - core index']
  #allocation1 [shape = 'u32[144,128]{1,0:T(1,128)}', space=vmem, size = 0x12000, scoped, tag = 'internal scratch']
  %s0 = inlined_call_operand.vmem [shape: bf16[32,16], index: 0, kind: input, shape index: {}]
  %s1 = inlined_call_operand.vmem [shape: bf16[16,64], index: 1, kind: input, shape index: {}]
  %s2 = inlined_call_operand.vmem [shape: f32[1,64], index: 2, kind: input, shape index: {}]
  %s3 = inlined_call_operand.vmem [shape: bf16[64,64], index: 3, kind: input, shape index: {}]
  %s4 = inlined_call_operand.vmem [shape: f32[1,64], index: 4, kind: input, shape index: {}]
  %s5 = inlined_call_operand.vmem [shape: bf16[64,32], index: 5, kind: input, shape index: {}]
  %s6 = inlined_call_operand.vmem [shape: f32[1,32], index: 6, kind: input, shape index: {}]
  %s7 = inlined_call_operand.vmem [shape: bf16[32,8], index: 7, kind: input, shape index: {}]
  %s8 = inlined_call_operand.vmem [shape: f32[1,8], index: 8, kind: input, shape index: {}]
  %s9 = inlined_call_operand.vmem [shape: f32[32,8], index: 9, kind: output, shape index: {}]
  %s10 = sld [smem:[#allocation0]]
  $region69: #{tpu_custom_call.1} parent=0
    _
  %s12 = ssub.s32 1, %s10
  %s13 = scalar_select 0, %s12, %s10
  loop: start=0, step=1, limit=4
  $region2: #{tpu_custom_call.1} parent=0 // loop_pre_header
    _
  $region3: #{tpu_custom_call.1} parent=0 // loop_header
    %s15 = sphi 0, %s19
    %p16 = scmp.ge.s32.totalorder %s15, 4
    %s25 = sphi 0, %s27
    %s28 = sphi 0, %s25
    %s29 = sphi 0, %s28
    %s45 = sphi 0, %s29
    %s49 = sphi 0, %s49
    %s51 = sphi 0, %s49
    %s52 = sphi 0, %s51
    %s66 = sphi 0, %s52
    %s70 = sphi 0, %s70
    %s72 = sphi 0, %s70
    %s73 = sphi 0, %s72
    %s87 = sphi 0, %s73
    %s91 = sphi 0, %s91
    %s93 = sphi 0, %s91
    %s94 = sphi 0, %s93
    %s108 = sphi 0, %s94
    %s112 = sphi 0, %s112
    %s114 = sphi 0, %s112
    %s115 = sphi 0, %s114
    %s129 = sphi 0, %s115
    %s133 = sphi 0, %s133
    %s135 = sphi 0, %s133
    %s136 = sphi 0, %s135
    %s150 = sphi 0, %s136
    %s154 = sphi 0, %s154
    %s156 = sphi 0, %s154
    %s157 = sphi 0, %s156
    %s171 = sphi 0, %s157
    %s175 = sphi 0, %s175
    %s177 = sphi 0, %s175
    %s178 = sphi 0, %s177
    %s192 = sphi 0, %s178
    %s196 = sphi 0, %s196
    %s198 = sphi 0, %s196
    %s199 = sphi 0, %s198
    %s213 = sphi 0, %s199
    %s219 = sphi 0, %s221
    %s222 = sphi 0, %s219
    %s223 = sphi 0, %s222
    %s239 = sphi 0, %s223
  $region4: #{tpu_custom_call.1} parent=0 // loop_header_branch
    %18 = sbr.rel (%p16) target = $region8
  $region5: #{tpu_custom_call.1} parent=0 // loop_body
    %s20 = ssub.s32 %s15, 1
    %s21 = ssub.s32 %s15, 2
    %s22 = sadd.s32 %s15, 1
    %s23 = ssub.s32 %s15, %s22
    %p24 = scmp.eq.s32.totalorder %s23, 0
    %s26 = sadd.s32 %s25, 1
    %s27 = scalar_select %p24, %s25, %s26
    %p30 = pneg %p24
    %p31 = scmp.eq.s32.totalorder %s15, 1
    %p32 = por %p30, %p31
    %p33 = scmp.ne.s32.totalorder %s25, %s28
    %p34 = scmp.eq.s32.totalorder %s15, 0
    %p35 = por %p33, %p34
    %p36 = scmp.ne.s32.totalorder %s25, %s28
    %p37 = scmp.eq.s32.totalorder %s20, 1
    %p38 = por %p36, %p37
    %p39 = scmp.ne.s32.totalorder %s28, %s29
    %p40 = scmp.eq.s32.totalorder %s20, 0
    %p41 = por %p39, %p40
    %p42 = scmp.ne.s32.totalorder %s28, %s29
    %p43 = scmp.eq.s32.totalorder %s21, 1
    %p44 = por %p42, %p43
    %p46 = scmp.ne.s32.totalorder %s29, %s45
    %p47 = scmp.eq.s32.totalorder %s21, 0
    %p48 = por %p46, %p47
    %s50 = sadd.s32 %s49, 1
    %p53 = scmp.eq.s32.totalorder %s15, 1
    %p54 = scmp.ne.s32.totalorder %s49, %s51
    %p55 = scmp.eq.s32.totalorder %s15, 0
    %p56 = por %p54, %p55
    %p57 = scmp.ne.s32.totalorder %s49, %s51
    %p58 = scmp.eq.s32.totalorder %s20, 1
    %p59 = por %p57, %p58
    %p60 = scmp.ne.s32.totalorder %s51, %s52
    %p61 = scmp.eq.s32.totalorder %s20, 0
    %p62 = por %p60, %p61
    %p63 = scmp.ne.s32.totalorder %s51, %s52
    %p64 = scmp.eq.s32.totalorder %s21, 1
    %p65 = por %p63, %p64
    %p67 = scmp.ne.s32.totalorder %s52, %s66
    %p68 = scmp.eq.s32.totalorder %s21, 0
    %p69 = por %p67, %p68
    %s71 = sadd.s32 %s70, 1
    %p74 = scmp.eq.s32.totalorder %s15, 1
    %p75 = scmp.ne.s32.totalorder %s70, %s72
    %p76 = scmp.eq.s32.totalorder %s15, 0
    %p77 = por %p75, %p76
    %p78 = scmp.ne.s32.totalorder %s70, %s72
    %p79 = scmp.eq.s32.totalorder %s20, 1
    %p80 = por %p78, %p79
    %p81 = scmp.ne.s32.totalorder %s72, %s73
    %p82 = scmp.eq.s32.totalorder %s20, 0
    %p83 = por %p81, %p82
    %p84 = scmp.ne.s32.totalorder %s72, %s73
    %p85 = scmp.eq.s32.totalorder %s21, 1
    %p86 = por %p84, %p85
    %p88 = scmp.ne.s32.totalorder %s73, %s87
    %p89 = scmp.eq.s32.totalorder %s21, 0
    %p90 = por %p88, %p89
    %s92 = sadd.s32 %s91, 1
    %p95 = scmp.eq.s32.totalorder %s15, 1
    %p96 = scmp.ne.s32.totalorder %s91, %s93
    %p97 = scmp.eq.s32.totalorder %s15, 0
    %p98 = por %p96, %p97
    %p99 = scmp.ne.s32.totalorder %s91, %s93
    %p100 = scmp.eq.s32.totalorder %s20, 1
    %p101 = por %p99, %p100
    %p102 = scmp.ne.s32.totalorder %s93, %s94
    %p103 = scmp.eq.s32.totalorder %s20, 0
    %p104 = por %p102, %p103
    %p105 = scmp.ne.s32.totalorder %s93, %s94
    %p106 = scmp.eq.s32.totalorder %s21, 1
    %p107 = por %p105, %p106
    %p109 = scmp.ne.s32.totalorder %s94, %s108
    %p110 = scmp.eq.s32.totalorder %s21, 0
    %p111 = por %p109, %p110
    %s113 = sadd.s32 %s112, 1
    %p116 = scmp.eq.s32.totalorder %s15, 1
    %p117 = scmp.ne.s32.totalorder %s112, %s114
    %p118 = scmp.eq.s32.totalorder %s15, 0
    %p119 = por %p117, %p118
    %p120 = scmp.ne.s32.totalorder %s112, %s114
    %p121 = scmp.eq.s32.totalorder %s20, 1
    %p122 = por %p120, %p121
    %p123 = scmp.ne.s32.totalorder %s114, %s115
    %p124 = scmp.eq.s32.totalorder %s20, 0
    %p125 = por %p123, %p124
    %p126 = scmp.ne.s32.totalorder %s114, %s115
    %p127 = scmp.eq.s32.totalorder %s21, 1
    %p128 = por %p126, %p127
    %p130 = scmp.ne.s32.totalorder %s115, %s129
    %p131 = scmp.eq.s32.totalorder %s21, 0
    %p132 = por %p130, %p131
    %s134 = sadd.s32 %s133, 1
    %p137 = scmp.eq.s32.totalorder %s15, 1
    %p138 = scmp.ne.s32.totalorder %s133, %s135
    %p139 = scmp.eq.s32.totalorder %s15, 0
    %p140 = por %p138, %p139
    %p141 = scmp.ne.s32.totalorder %s133, %s135
    %p142 = scmp.eq.s32.totalorder %s20, 1
    %p143 = por %p141, %p142
    %p144 = scmp.ne.s32.totalorder %s135, %s136
    %p145 = scmp.eq.s32.totalorder %s20, 0
    %p146 = por %p144, %p145
    %p147 = scmp.ne.s32.totalorder %s135, %s136
    %p148 = scmp.eq.s32.totalorder %s21, 1
    %p149 = por %p147, %p148
    %p151 = scmp.ne.s32.totalorder %s136, %s150
    %p152 = scmp.eq.s32.totalorder %s21, 0
    %p153 = por %p151, %p152
    %s155 = sadd.s32 %s154, 1
    %p158 = scmp.eq.s32.totalorder %s15, 1
    %p159 = scmp.ne.s32.totalorder %s154, %s156
    %p160 = scmp.eq.s32.totalorder %s15, 0
    %p161 = por %p159, %p160
    %p162 = scmp.ne.s32.totalorder %s154, %s156
    %p163 = scmp.eq.s32.totalorder %s20, 1
    %p164 = por %p162, %p163
    %p165 = scmp.ne.s32.totalorder %s156, %s157
    %p166 = scmp.eq.s32.totalorder %s20, 0
    %p167 = por %p165, %p166
    %p168 = scmp.ne.s32.totalorder %s156, %s157
    %p169 = scmp.eq.s32.totalorder %s21, 1
    %p170 = por %p168, %p169
    %p172 = scmp.ne.s32.totalorder %s157, %s171
    %p173 = scmp.eq.s32.totalorder %s21, 0
    %p174 = por %p172, %p173
    %s176 = sadd.s32 %s175, 1
    %p179 = scmp.eq.s32.totalorder %s15, 1
    %p180 = scmp.ne.s32.totalorder %s175, %s177
    %p181 = scmp.eq.s32.totalorder %s15, 0
    %p182 = por %p180, %p181
    %p183 = scmp.ne.s32.totalorder %s175, %s177
    %p184 = scmp.eq.s32.totalorder %s20, 1
    %p185 = por %p183, %p184
    %p186 = scmp.ne.s32.totalorder %s177, %s178
    %p187 = scmp.eq.s32.totalorder %s20, 0
    %p188 = por %p186, %p187
    %p189 = scmp.ne.s32.totalorder %s177, %s178
    %p190 = scmp.eq.s32.totalorder %s21, 1
    %p191 = por %p189, %p190
    %p193 = scmp.ne.s32.totalorder %s178, %s192
    %p194 = scmp.eq.s32.totalorder %s21, 0
    %p195 = por %p193, %p194
    %s197 = sadd.s32 %s196, 1
    %p200 = scmp.eq.s32.totalorder %s15, 1
    %p201 = scmp.ne.s32.totalorder %s196, %s198
    %p202 = scmp.eq.s32.totalorder %s15, 0
    %p203 = por %p201, %p202
    %p204 = scmp.ne.s32.totalorder %s196, %s198
    %p205 = scmp.eq.s32.totalorder %s20, 1
    %p206 = por %p204, %p205
    %p207 = scmp.ne.s32.totalorder %s198, %s199
    %p208 = scmp.eq.s32.totalorder %s20, 0
    %p209 = por %p207, %p208
    %p210 = scmp.ne.s32.totalorder %s198, %s199
    %p211 = scmp.eq.s32.totalorder %s21, 1
    %p212 = por %p210, %p211
    %p214 = scmp.ne.s32.totalorder %s199, %s213
    %p215 = scmp.eq.s32.totalorder %s21, 0
    %p216 = por %p214, %p215
    %s217 = ssub.s32 %s15, %s22
    %p218 = scmp.eq.s32.totalorder %s217, 0
    %s220 = sadd.s32 %s219, 1
    %s221 = scalar_select %p218, %s219, %s220
    %p224 = pneg %p218
    %p225 = scmp.eq.s32.totalorder %s15, 1
    %p226 = por %p224, %p225
    %p227 = scmp.ne.s32.totalorder %s219, %s222
    %p228 = scmp.eq.s32.totalorder %s15, 0
    %p229 = por %p227, %p228
    %p230 = scmp.ne.s32.totalorder %s219, %s222
    %p231 = scmp.eq.s32.totalorder %s20, 1
    %p232 = por %p230, %p231
    %p233 = scmp.ne.s32.totalorder %s222, %s223
    %p234 = scmp.eq.s32.totalorder %s20, 0
    %p235 = por %p233, %p234
    %p236 = scmp.ne.s32.totalorder %s222, %s223
    %p237 = scmp.eq.s32.totalorder %s21, 1
    %p238 = por %p236, %p237
    %p240 = scmp.ne.s32.totalorder %s223, %s239
    %p241 = scmp.eq.s32.totalorder %s21, 0
    %p242 = por %p240, %p241
    %p243 = scmp.le.s32.totalorder 1, %s15
    %p244 = scmp.lt.s32.totalorder %s15, 3
    %p245 = pnand %p243, %p244
    %p246 = pneg %p245
    // Predicated region
    $region9: #{tpu_custom_call.1} parent=5 // pred_check
      _
    $region10: #{tpu_custom_call.1} parent=5 // pred_check_branch
      %248 = sbr.rel (%p245) target = $region12
    $region11: #{tpu_custom_call.1} parent=5 // pred_region
      %s249 = ssub.s32 %s15, 1
      // Predicated region
      $region13: #{tpu_custom_call.1} parent=11 // pred_check
        %p250 = pneg %p62
      $region14: #{tpu_custom_call.1} parent=11 // pred_check_branch
        %252 = sbr.rel (%p250) target = $region16
      $region15: #{tpu_custom_call.1} parent=11 // pred_region
        _
      $region16: #{tpu_custom_call.1} parent=11 // pred_fallthru
        _
      // Predicated region
      $region17: #{tpu_custom_call.1} parent=11 // pred_check
        %p253 = pneg %p83
      $region18: #{tpu_custom_call.1} parent=11 // pred_check_branch
        %255 = sbr.rel (%p253) target = $region20
      $region19: #{tpu_custom_call.1} parent=11 // pred_region
        _
      $region20: #{tpu_custom_call.1} parent=11 // pred_fallthru
        _
      // Predicated region
      $region21: #{tpu_custom_call.1} parent=11 // pred_check
        %p256 = pneg %p104
      $region22: #{tpu_custom_call.1} parent=11 // pred_check_branch
        %258 = sbr.rel (%p256) target = $region24
      $region23: #{tpu_custom_call.1} parent=11 // pred_region
        _
      $region24: #{tpu_custom_call.1} parent=11 // pred_fallthru
        _
      // Predicated region
      $region25: #{tpu_custom_call.1} parent=11 // pred_check
        %p259 = pneg %p125
      $region26: #{tpu_custom_call.1} parent=11 // pred_check_branch
        %261 = sbr.rel (%p259) target = $region28
      $region27: #{tpu_custom_call.1} parent=11 // pred_region
        _
      $region28: #{tpu_custom_call.1} parent=11 // pred_fallthru
        _
      // Predicated region
      $region29: #{tpu_custom_call.1} parent=11 // pred_check
        %p262 = pneg %p146
      $region30: #{tpu_custom_call.1} parent=11 // pred_check_branch
        %264 = sbr.rel (%p262) target = $region32
      $region31: #{tpu_custom_call.1} parent=11 // pred_region
        _
      $region32: #{tpu_custom_call.1} parent=11 // pred_fallthru
        _
      // Predicated region
      $region33: #{tpu_custom_call.1} parent=11 // pred_check
        %p265 = pneg %p167
      $region34: #{tpu_custom_call.1} parent=11 // pred_check_branch
        %267 = sbr.rel (%p265) target = $region36
      $region35: #{tpu_custom_call.1} parent=11 // pred_region
        _
      $region36: #{tpu_custom_call.1} parent=11 // pred_fallthru
        _
      // Predicated region
      $region37: #{tpu_custom_call.1} parent=11 // pred_check
        %p268 = pneg %p188
      $region38: #{tpu_custom_call.1} parent=11 // pred_check_branch
        %270 = sbr.rel (%p268) target = $region40
      $region39: #{tpu_custom_call.1} parent=11 // pred_region
        _
      $region40: #{tpu_custom_call.1} parent=11 // pred_fallthru
        _
      // Predicated region
      $region41: #{tpu_custom_call.1} parent=11 // pred_check
        %p271 = pneg %p209
      $region42: #{tpu_custom_call.1} parent=11 // pred_check_branch
        %273 = sbr.rel (%p271) target = $region44
      $region43: #{tpu_custom_call.1} parent=11 // pred_region
        _
      $region44: #{tpu_custom_call.1} parent=11 // pred_fallthru
        _
    $region12: #{tpu_custom_call.1} parent=5 // pred_fallthru
      _
    %p274 = scmp.lt.s32.totalorder %s15, 2
    // Predicated region
    $region45: #{tpu_custom_call.1} parent=5 // pred_check
      %p275 = pneg %p274
    $region46: #{tpu_custom_call.1} parent=5 // pred_check_branch
      %277 = sbr.rel (%p275) target = $region48
    $region47: #{tpu_custom_call.1} parent=5 // pred_region
      // Predicated region
      $region49: #{tpu_custom_call.1} parent=47 // pred_check
        %p278 = pneg %p35
      $region50: #{tpu_custom_call.1} parent=47 // pred_check_branch
        %280 = sbr.rel (%p278) target = $region52
      $region51: #{tpu_custom_call.1} parent=47 // pred_region
        %s281 = smul.u32 2, %s15
        %p282 = scmp.lt.s32.totalorder %s281, 3
        %s283 = scalar_select %p282, %s281, 3
        %s284 = smul.addr %s283, 4
        %s285 = scalar_lea.vmem %s0, %s284
        %s286 = smul.u32 2, %s15
      $region52: #{tpu_custom_call.1} parent=47 // pred_fallthru
        _
    $region48: #{tpu_custom_call.1} parent=5 // pred_fallthru
      _
    %p287 = scmp.le.s32.totalorder 1, %s15
    %p288 = scmp.lt.s32.totalorder %s15, 3
    %p289 = pnand %p287, %p288
    %p290 = pneg %p289
    // Predicated region
    $region53: #{tpu_custom_call.1} parent=5 // pred_check
      _
    $region54: #{tpu_custom_call.1} parent=5 // pred_check_branch
      %292 = sbr.rel (%p289) target = $region56
    $region55: #{tpu_custom_call.1} parent=5 // pred_region
      %s293 = ssub.s32 %s15, 1
      %s294 = smul.u32 2, %s20
      %p295 = scmp.lt.s32.totalorder %s294, 3
      %s296 = scalar_select %p295, %s294, 3
      %s297 = smul.addr %s296, 4
      %s298 = scalar_lea.vmem %s0, %s297
      %p299 = pneg %p41
      %p300 = pneg %p38
      %p301 = pneg %p62
      %p302 = pneg %p59
      %p303 = pneg %p83
      %p304 = pneg %p80
      %p305 = pneg %p104
      %p306 = pneg %p101
      %p307 = pneg %p125
      %p308 = pneg %p122
      %p309 = pneg %p146
      %p310 = pneg %p143
      %p311 = pneg %p167
      %p312 = pneg %p164
      %p313 = pneg %p188
      %p314 = pneg %p185
      %p315 = pneg %p209
      %p316 = pneg %p206
      %p317 = pneg %p235
      %p318 = pneg %p232
      %s319 = smul.u32 2, %s20
      %p320 = scmp.lt.s32.totalorder %s319, 3
      %s321 = scalar_select %p320, %s319, 3
      %s322 = smul.addr %s321, 8
      %s323 = scalar_lea.vmem %s9, %s322
      %s324 = smul.u32 2, %s20
      %p325 = scmp.lt.s32.totalorder %s324, 3
      %s326 = scalar_select %p325, %s324, 3
      %s327 = smul.addr %s326, 4
      %s328 = scalar_lea.vmem %s0, %s327
      %s329 = smul.u32 2, %s20
      %s330 = smul.u32 2, %s20
      %p331 = scmp.lt.s32.totalorder %s330, 3
      %s332 = scalar_select %p331, %s330, 3
      %s333 = smul.addr %s332, 8
      %s334 = scalar_lea.vmem %s9, %s333
      %s335 = smul.u32 2, %s20
      %v337 = vld [vmem:[%s328] sm:$0xf]
      %v338 = vld [vmem:[%s328 + $0x4] sm:$0xf]
      %v339 = vld [vmem:[%s1] sm:$0xf]
      %v340 = vld [vmem:[%s1 + $0x4] sm:$0xf]
      %v341 = vld [vmem:[%s2] sm:$0x1]
      %v343 = vlaneseq
      %v344 = vshrl.u32 %v343, 7
      %v345 = vsub.s32 0, %v344
      %v346 = vrot.slane %v341, %v345
      %v350 = vunpack.c.l.b16 %v337
      %v351 = vunpack.c.l.b16 %v338
      %v352 = vpack.c.b16 %v351, %v350
      %v355 = vunpack.c.l.b16 %v339
      %v356 = vunpack.c.l.b16 %v340
      %v357 = vpack.c.b16 %v356, %v355
      %vm359 = vcmask 130048
      %v361 = vsel %vm359, %v352, 0
      %363 = vmatprep.subr.bf16.mxu0 0
      %364 = vmatpush1.bf16.msra.mxu0 %v357
      %365 = vmatprep.subr.bf16.mxu0 0
      %366 = vmatpush1.bf16.msra.mxu0 0
      %367 = vmatprep.subr.bf16.mxu0 0
      %368 = vmatpush1.bf16.msra.mxu0 0
      %369 = vmatprep.subr.bf16.mxu0 0
      %370 = vmatpush1.bf16.msra.mxu0 0
      %371 = vmatprep.subr.bf16.mxu0 0
      %372 = vmatpush1.bf16.msra.mxu0 0
      %373 = vmatprep.subr.bf16.mxu0 0
      %374 = vmatpush1.bf16.msra.mxu0 0
      %375 = vmatprep.subr.bf16.mxu0 0
      %376 = vmatpush1.bf16.msra.mxu0 0
      %377 = vmatprep.subr.bf16.mxu0 0
      %378 = vmatpush1.bf16.msra.mxu0 0
      %379 = vmatprep.subr.bf16.mxu0 0
      %380 = vmatpush1.bf16.msra.mxu0 0
      %381 = vmatprep.subr.bf16.mxu0 0
      %382 = vmatpush1.bf16.msra.mxu0 0
      %383 = vmatprep.subr.bf16.mxu0 0
      %384 = vmatpush1.bf16.msra.mxu0 0
      %385 = vmatprep.subr.bf16.mxu0 0
      %386 = vmatpush1.bf16.msra.mxu0 0
      %387 = vmatprep.subr.bf16.mxu0 0
      %388 = vmatpush1.bf16.msra.mxu0 0
      %389 = vmatprep.subr.bf16.mxu0 0
      %390 = vmatpush1.bf16.msra.mxu0 0
      %391 = vmatprep.subr.bf16.mxu0 0
      %392 = vmatpush1.bf16.msra.mxu0 0
      %393 = vmatprep.subr.bf16.mxu0 0
      %394 = vmatpush1.bf16.msra.mxu0 0
      %395 = vmatprep.mubr.bf16.mxu0 0
      %396 = vmatmul.mubr.bf16.gmra.mrb[0].mxu0 %v361
      %v397 = vpop.f32.mrb[0].mxu0
      %v398 = vadd.f32 %v346, %v397
      %v399 = vpop.f32.mrb[0].mxu0
      %v400 = vpop.f32.mrb[0].mxu0
      %v401 = vadd.f32 %v346, %v400
      %v402 = vpop.f32.mrb[0].mxu0
      %403 = vdwg.mxu0
      %v404 = vmul.f32 %v398, 0.01
      %v405 = vmul.f32 %v401, 0.01
      %v406 = vmax.f32 %v398, %v404
      %v407 = vmax.f32 %v401, %v405
      %v408 = vpack.c.bf16 %v407, %v406
      %v409 = vld [vmem:[%s3] sm:$0xf]
      %v410 = vld [vmem:[%s3 + $0x4] sm:$0xf]
      %v411 = vld [vmem:[%s3 + $0x8] sm:$0xf]
      %v412 = vld [vmem:[%s3 + $0xc] sm:$0xf]
      %v413 = vld [vmem:[%s3 + $0x10] sm:$0xf]
      %v414 = vld [vmem:[%s3 + $0x14] sm:$0xf]
      %v415 = vld [vmem:[%s3 + $0x18] sm:$0xf]
      %v416 = vld [vmem:[%s3 + $0x1c] sm:$0xf]
      %v417 = vld [vmem:[%s4] sm:$0x1]
      %v419 = vlaneseq
      %v420 = vshrl.u32 %v419, 7
      %v421 = vsub.s32 0, %v420
      %v422 = vrot.slane %v417, %v421
      %v432 = vunpack.c.l.b16 %v409
      %v433 = vunpack.c.l.b16 %v410
      %v434 = vunpack.c.l.b16 %v411
      %v435 = vunpack.c.l.b16 %v412
      %v436 = vunpack.c.l.b16 %v413
      %v437 = vunpack.c.l.b16 %v414
      %v438 = vunpack.c.l.b16 %v415
      %v439 = vunpack.c.l.b16 %v416
      %v440 = vpack.c.b16 %v433, %v432
      %v441 = vpack.c.b16 %v435, %v434
      %v442 = vpack.c.b16 %v437, %v436
      %v443 = vpack.c.b16 %v439, %v438
      %vm448 = vcmask 523264
      %v450 = vsel %vm448, %v408, 0
      %452 = vmatprep.subr.bf16.mxu0 0
      %453 = vmatpush1.bf16.msra.mxu0 %v440
      %454 = vmatprep.subr.bf16.mxu0 0
      %455 = vmatpush1.bf16.msra.mxu0 %v441
      %456 = vmatprep.subr.bf16.mxu0 0
      %457 = vmatpush1.bf16.msra.mxu0 %v442
      %458 = vmatprep.subr.bf16.mxu0 0
      %459 = vmatpush1.bf16.msra.mxu0 %v443
      %460 = vmatprep.subr.bf16.mxu0 0
      %461 = vmatpush1.bf16.msra.mxu0 0
      %462 = vmatprep.subr.bf16.mxu0 0
      %463 = vmatpush1.bf16.msra.mxu0 0
      %464 = vmatprep.subr.bf16.mxu0 0
      %465 = vmatpush1.bf16.msra.mxu0 0
      %466 = vmatprep.subr.bf16.mxu0 0
      %467 = vmatpush1.bf16.msra.mxu0 0
      %468 = vmatprep.subr.bf16.mxu0 0
      %469 = vmatpush1.bf16.msra.mxu0 0
      %470 = vmatprep.subr.bf16.mxu0 0
      %471 = vmatpush1.bf16.msra.mxu0 0
      %472 = vmatprep.subr.bf16.mxu0 0
      %473 = vmatpush1.bf16.msra.mxu0 0
      %474 = vmatprep.subr.bf16.mxu0 0
      %475 = vmatpush1.bf16.msra.mxu0 0
      %476 = vmatprep.subr.bf16.mxu0 0
      %477 = vmatpush1.bf16.msra.mxu0 0
      %478 = vmatprep.subr.bf16.mxu0 0
      %479 = vmatpush1.bf16.msra.mxu0 0
      %480 = vmatprep.subr.bf16.mxu0 0
      %481 = vmatpush1.bf16.msra.mxu0 0
      %482 = vmatprep.subr.bf16.mxu0 0
      %483 = vmatpush1.bf16.msra.mxu0 0
      %484 = vmatprep.mubr.bf16.mxu0 0
      %485 = vmatmul.mubr.bf16.gmra.mrb[0].mxu0 %v450
      %v486 = vpop.f32.mrb[0].mxu0
      %v487 = vadd.f32 %v422, %v486
      %v488 = vpop.f32.mrb[0].mxu0
      %v489 = vpop.f32.mrb[0].mxu0
      %v490 = vadd.f32 %v422, %v489
      %v491 = vpop.f32.mrb[0].mxu0
      %492 = vdwg.mxu0
      %v493 = vmul.f32 %v487, 0.01
      %v494 = vmul.f32 %v490, 0.01
      %v495 = vmax.f32 %v487, %v493
      %v496 = vmax.f32 %v490, %v494
      %v497 = vpack.c.bf16 %v496, %v495
      %v498 = vld [vmem:[%s5] sm:$0xf]
      %v499 = vld [vmem:[%s5 + $0x4] sm:$0xf]
      %v500 = vld [vmem:[%s5 + $0x8] sm:$0xf]
      %v501 = vld [vmem:[%s5 + $0xc] sm:$0xf]
      %v502 = vld [vmem:[%s5 + $0x10] sm:$0xf]
      %v503 = vld [vmem:[%s5 + $0x14] sm:$0xf]
      %v504 = vld [vmem:[%s5 + $0x18] sm:$0xf]
      %v505 = vld [vmem:[%s5 + $0x1c] sm:$0xf]
      %v506 = vld [vmem:[%s6] sm:$0x1]
      %v508 = vlaneseq
      %v509 = vshrl.u32 %v508, 7
      %v510 = vsub.s32 0, %v509
      %v511 = vrot.slane %v506, %v510
      %v521 = vunpack.c.l.b16 %v498
      %v522 = vunpack.c.l.b16 %v499
      %v523 = vunpack.c.l.b16 %v500
      %v524 = vunpack.c.l.b16 %v501
      %v525 = vunpack.c.l.b16 %v502
      %v526 = vunpack.c.l.b16 %v503
      %v527 = vunpack.c.l.b16 %v504
      %v528 = vunpack.c.l.b16 %v505
      %v529 = vpack.c.b16 %v522, %v521
      %v530 = vpack.c.b16 %v524, %v523
      %v531 = vpack.c.b16 %v526, %v525
      %v532 = vpack.c.b16 %v528, %v527
      %v538 = vsel %vm448, %v497, 0
      %540 = vmatprep.subr.bf16.mxu0 0
      %541 = vmatpush1.bf16.msra.mxu0 %v529
      %542 = vmatprep.subr.bf16.mxu0 0
      %543 = vmatpush1.bf16.msra.mxu0 %v530
      %544 = vmatprep.subr.bf16.mxu0 0
      %545 = vmatpush1.bf16.msra.mxu0 %v531
      %546 = vmatprep.subr.bf16.mxu0 0
      %547 = vmatpush1.bf16.msra.mxu0 %v532
      %548 = vmatprep.subr.bf16.mxu0 0
      %549 = vmatpush1.bf16.msra.mxu0 0
      %550 = vmatprep.subr.bf16.mxu0 0
      %551 = vmatpush1.bf16.msra.mxu0 0
      %552 = vmatprep.subr.bf16.mxu0 0
      %553 = vmatpush1.bf16.msra.mxu0 0
      %554 = vmatprep.subr.bf16.mxu0 0
      %555 = vmatpush1.bf16.msra.mxu0 0
      %556 = vmatprep.subr.bf16.mxu0 0
      %557 = vmatpush1.bf16.msra.mxu0 0
      %558 = vmatprep.subr.bf16.mxu0 0
      %559 = vmatpush1.bf16.msra.mxu0 0
      %560 = vmatprep.subr.bf16.mxu0 0
      %561 = vmatpush1.bf16.msra.mxu0 0
      %562 = vmatprep.subr.bf16.mxu0 0
      %563 = vmatpush1.bf16.msra.mxu0 0
      %564 = vmatprep.subr.bf16.mxu0 0
      %565 = vmatpush1.bf16.msra.mxu0 0
      %566 = vmatprep.subr.bf16.mxu0 0
      %567 = vmatpush1.bf16.msra.mxu0 0
      %568 = vmatprep.subr.bf16.mxu0 0
      %569 = vmatpush1.bf16.msra.mxu0 0
      %570 = vmatprep.subr.bf16.mxu0 0
      %571 = vmatpush1.bf16.msra.mxu0 0
      %572 = vmatprep.mubr.bf16.mxu0 0
      %573 = vmatmul.mubr.bf16.gmra.mrb[0].mxu0 %v538
      %v574 = vpop.f32.mrb[0].mxu0
      %v575 = vadd.f32 %v511, %v574
      %v576 = vpop.f32.mrb[0].mxu0
      %v577 = vpop.f32.mrb[0].mxu0
      %v578 = vadd.f32 %v511, %v577
      %v579 = vpop.f32.mrb[0].mxu0
      %580 = vdwg.mxu0
      %v581 = vmul.f32 %v575, 0.01
      %v582 = vmul.f32 %v578, 0.01
      %v583 = vmax.f32 %v575, %v581
      %v584 = vmax.f32 %v578, %v582
      %v585 = vpack.c.bf16 %v584, %v583
      %v586 = vld [vmem:[%s7] sm:$0xf]
      %v587 = vld [vmem:[%s7 + $0x4] sm:$0xf]
      %v588 = vld [vmem:[%s7 + $0x8] sm:$0xf]
      %v589 = vld [vmem:[%s7 + $0xc] sm:$0xf]
      %v590 = vld [vmem:[%s8] sm:$0x1]
      %v592 = vlaneseq
      %v593 = vshrl.u32 %v592, 7
      %v594 = vsub.s32 0, %v593
      %v595 = vrot.slane %v590, %v594
      %v601 = vunpack.c.l.b16 %v586
      %v602 = vunpack.c.l.b16 %v587
      %v603 = vunpack.c.l.b16 %v588
      %v604 = vunpack.c.l.b16 %v589
      %v605 = vpack.c.b16 %v602, %v601
      %v606 = vpack.c.b16 %v604, %v603
      %vm609 = vcmask 261120
      %v611 = vsel %vm609, %v585, 0
      %613 = vmatprep.subr.bf16.mxu0 0
      %614 = vmatpush1.bf16.msra.mxu0 %v605
      %615 = vmatprep.subr.bf16.mxu0 0
      %616 = vmatpush1.bf16.msra.mxu0 %v606
      %617 = vmatprep.subr.bf16.mxu0 0
      %618 = vmatpush1.bf16.msra.mxu0 0
      %619 = vmatprep.subr.bf16.mxu0 0
      %620 = vmatpush1.bf16.msra.mxu0 0
      %621 = vmatprep.subr.bf16.mxu0 0
      %622 = vmatpush1.bf16.msra.mxu0 0
      %623 = vmatprep.subr.bf16.mxu0 0
      %624 = vmatpush1.bf16.msra.mxu0 0
      %625 = vmatprep.subr.bf16.mxu0 0
      %626 = vmatpush1.bf16.msra.mxu0 0
      %627 = vmatprep.subr.bf16.mxu0 0
      %628 = vmatpush1.bf16.msra.mxu0 0
      %629 = vmatprep.subr.bf16.mxu0 0
      %630 = vmatpush1.bf16.msra.mxu0 0
      %631 = vmatprep.subr.bf16.mxu0 0
      %632 = vmatpush1.bf16.msra.mxu0 0
      %633 = vmatprep.subr.bf16.mxu0 0
      %634 = vmatpush1.bf16.msra.mxu0 0
      %635 = vmatprep.subr.bf16.mxu0 0
      %636 = vmatpush1.bf16.msra.mxu0 0
      %637 = vmatprep.subr.bf16.mxu0 0
      %638 = vmatpush1.bf16.msra.mxu0 0
      %639 = vmatprep.subr.bf16.mxu0 0
      %640 = vmatpush1.bf16.msra.mxu0 0
      %641 = vmatprep.subr.bf16.mxu0 0
      %642 = vmatpush1.bf16.msra.mxu0 0
      %643 = vmatprep.subr.bf16.mxu0 0
      %644 = vmatpush1.bf16.msra.mxu0 0
      %645 = vmatprep.mubr.bf16.mxu0 0
      %646 = vmatmul.mubr.bf16.gmra.mrb[0].mxu0 %v611
      %v647 = vpop.f32.mrb[0].mxu0
      %v648 = vadd.f32 %v595, %v647
      %v649 = vpop.f32.mrb[0].mxu0
      %v650 = vpop.f32.mrb[0].mxu0
      %v651 = vadd.f32 %v595, %v650
      %v652 = vpop.f32.mrb[0].mxu0
      %653 = vdwg.mxu0
      %vm654 = vcmask 64512
      %655 = vst.msk [vmem:[%s334] sm:$0xff] %vm654, %v648
      %656 = vst.msk [vmem:[%s334 + $0x8] sm:$0xff] %vm654, %v651
      %s657 = smul.u32 2, %s20
      %p658 = scmp.lt.s32.totalorder %s657, 3
      %s659 = scalar_select %p658, %s657, 3
      %s660 = smul.addr %s659, 8
      %s661 = scalar_lea.vmem %s9, %s660
      // Predicated region
      $region57: #{tpu_custom_call.1} parent=55 // pred_check
        %p662 = pneg %p232
      $region58: #{tpu_custom_call.1} parent=55 // pred_check_branch
        %664 = sbr.rel (%p662) target = $region60
      $region59: #{tpu_custom_call.1} parent=55 // pred_region
        %s665 = smul.u32 2, %s20
      $region60: #{tpu_custom_call.1} parent=55 // pred_fallthru
        _
    $region56: #{tpu_custom_call.1} parent=5 // pred_fallthru
      _
    %p666 = scmp.le.s32.totalorder 2, %s15
    // Predicated region
    $region61: #{tpu_custom_call.1} parent=5 // pred_check
      %p667 = pneg %p666
    $region62: #{tpu_custom_call.1} parent=5 // pred_check_branch
      %669 = sbr.rel (%p667) target = $region64
    $region63: #{tpu_custom_call.1} parent=5 // pred_region
      %s670 = ssub.s32 %s15, 2
      // Predicated region
      $region65: #{tpu_custom_call.1} parent=63 // pred_check
        %p671 = pneg %p238
      $region66: #{tpu_custom_call.1} parent=63 // pred_check_branch
        %673 = sbr.rel (%p671) target = $region68
      $region67: #{tpu_custom_call.1} parent=63 // pred_region
        %s674 = smul.u32 2, %s21
        %p675 = scmp.lt.s32.totalorder %s674, 3
        %s676 = scalar_select %p675, %s674, 3
        %s677 = smul.addr %s676, 8
        %s678 = scalar_lea.vmem %s9, %s677
      $region68: #{tpu_custom_call.1} parent=63 // pred_fallthru
        _
    $region64: #{tpu_custom_call.1} parent=5 // pred_fallthru
      _
  $region6: #{tpu_custom_call.1} parent=0 // loop_footer
    %s19 = sadd.s32 1, %s15
  $region7: #{tpu_custom_call.1} parent=0 // loop_footer_branch
    %14 = sbr.rel target = $region3
  $region8: #{tpu_custom_call.1} parent=0 // loop_exit
    _

</llo_original>
